<compile_context>
chip_gen: v6e
topology: v6e:2x2x1
jax: 0.10.0
libtpu: 0.0.40
codegen_flags: <defaults>
</compile_context>

<pallas_src>
import jax
import jax.numpy as jnp
from jax.experimental import pallas as pl
from jax.experimental.pallas import tpu as pltpu


def dqn_kernel(x_ref, w1_ref, b1_ref, w2_ref, b2_ref, w3_ref, b3_ref, o_ref):
    # fc1 + relu (bf16 operands, f32 accumulate, f32 bias)
    h1 = jnp.dot(x_ref[...], w1_ref[...], preferred_element_type=jnp.float32)
    h1 = jnp.maximum(h1 + b1_ref[...], 0.0)
    # fc2 + relu
    h2 = jnp.dot(h1.astype(jnp.bfloat16), w2_ref[...],
                 preferred_element_type=jnp.float32)
    h2 = jnp.maximum(h2 + b2_ref[...], 0.0)
    # fc3 (no activation); output is lane-padded to a multiple of 128
    out = jnp.dot(h2.astype(jnp.bfloat16), w3_ref[...],
                  preferred_element_type=jnp.float32)
    o_ref[...] = (out + b3_ref[...]).astype(o_ref.dtype)


def _round_up(n, m):
    return ((n + m - 1) // m) * m


def dqn_forward(x, params, *, block_batch=512):
    """x: [B, state_size] f32. params: dict of (w1,b1,w2,b2,w3,b3).

    Returns [B, action_size] f32 Q-values.
    """
    w1, b1, w2, b2, w3, b3 = (params[k] for k in ("w1", "b1", "w2", "b2", "w3", "b3"))
    B, S = x.shape
    A = w3.shape[1]

    # Lane-dense output: pad action dim to a multiple of 128 (zeros in the
    # extra weight/bias columns -> padded output columns are just dropped).
    A_pad = _round_up(A, 128)
    w3p = jnp.zeros((w3.shape[0], A_pad), w3.dtype).at[:, :A].set(w3)
    b3p = jnp.zeros((1, A_pad), b3.dtype).at[:, :A].set(b3)

    # Batch tile: multiple of 8 (f32 sublane), capped by block_batch.
    TB = _round_up(min(block_batch, _round_up(B, 8)), 8)
    Bp = _round_up(B, TB)
    xp = x if Bp == B else jnp.zeros((Bp, S), x.dtype).at[:B].set(x)

    # bf16 matmul operands; biases + accumulation stay f32.
    xb = xp.astype(jnp.bfloat16)
    w1b = w1.astype(jnp.bfloat16)
    w2b = w2.astype(jnp.bfloat16)
    w3b = w3p.astype(jnp.bfloat16)

    vmem = pltpu.MemorySpace.VMEM
    x_spec = pl.BlockSpec((TB, S), lambda i: (i, 0), memory_space=vmem)
    out_spec = pl.BlockSpec((TB, A_pad), lambda i: (i, 0), memory_space=vmem)
    # Weights/biases: full block, same block index every step -> VMEM-resident.
    full = lambda shape: pl.BlockSpec(shape, lambda i: (0, 0), memory_space=vmem)

    out = pl.pallas_call(
        dqn_kernel,
        out_shape=jax.ShapeDtypeStruct((Bp, A_pad), jnp.float32),
        grid=(Bp // TB,),
        in_specs=[
            x_spec,
            full(w1b.shape), full(b1.shape),
            full(w2b.shape), full(b2.shape),
            full(w3b.shape), full(b3p.shape),
        ],
        out_specs=out_spec,
        compiler_params=pltpu.CompilerParams(
            dimension_semantics=("parallel",)),
    )(xb, w1b, b1, w2b, b2, w3b, b3p)

    return out[:B, :A]


def init_params(key, state_size, action_size, fc1_units=64, fc2_units=64):
    """Deterministic init mimicking PyTorch nn.Linear default
    (U[-1/sqrt(fan_in), +1/sqrt(fan_in)])."""
    def linear(key, fan_in, fan_out):
        kw, kb = jax.random.split(key)
        bound = 1.0 / jnp.sqrt(fan_in)
        w = jax.random.uniform(kw, (fan_in, fan_out), jnp.float32, -bound, bound)
        b = jax.random.uniform(kb, (1, fan_out), jnp.float32, -bound, bound)
        return w, b

    k1, k2, k3 = jax.random.split(key, 3)
    w1, b1 = linear(k1, state_size, fc1_units)
    w2, b2 = linear(k2, fc1_units, fc2_units)
    w3, b3 = linear(k3, fc2_units, action_size)
    return {"w1": w1, "b1": b1, "w2": w2, "b2": b2, "w3": w3, "b3": b3}


def _ref_forward_bf16(x, params):
    """Pure-JAX reference with the same bf16-operand / f32-accumulate recipe."""
    c = lambda a: a.astype(jnp.bfloat16)
    h1 = jnp.maximum(
        jnp.dot(c(x), c(params["w1"]), preferred_element_type=jnp.float32)
        + params["b1"], 0.0)
    h2 = jnp.maximum(
        jnp.dot(c(h1), c(params["w2"]), preferred_element_type=jnp.float32)
        + params["b2"], 0.0)
    return jnp.dot(c(h2), c(params["w3"]),
                   preferred_element_type=jnp.float32) + params["b3"]


def _ref_forward_f32(x, params):
    h1 = jnp.maximum(x @ params["w1"] + params["b1"], 0.0)
    h2 = jnp.maximum(h1 @ params["w2"] + params["b2"], 0.0)
    return h2 @ params["w3"] + params["b3"]


if __name__ == "__main__":
    # LunarLander-v2: state_size=8, action_size=4.
    # B=250 exercises both the batch grid (TB=128 -> 2 tiles) and batch padding.
    batch, state_size, action_size = 250, 8, 4
    key = jax.random.PRNGKey(0)
    kx, kp = jax.random.split(key)

    x = jax.random.normal(kx, (batch, state_size), jnp.float32)
    params = init_params(kp, state_size, action_size)

    q_values = dqn_forward(x, params, block_batch=128)
    jax.block_until_ready(q_values)
    assert q_values.shape == (batch, action_size)

    # Tight check vs a reference using the identical bf16/f32-acc recipe.
    ref_bf16 = _ref_forward_bf16(x, params)
    assert jnp.allclose(q_values, ref_bf16, atol=1e-4, rtol=1e-4)

    # Loose semantic check vs the pure-f32 PyTorch-equivalent forward.
    ref_f32 = _ref_forward_f32(x, params)
    assert jnp.allclose(q_values, ref_f32, atol=1.5e-1, rtol=5e-2)

    print("KERNEL_OK")
</pallas_src>

<mosaic_0001>
module attributes {stable_mosaic.version = 11 : i64} {
  func.func @dqn_kernel(%arg0: i32, %arg1: memref<128x8xbf16, #tpu.memory_space<vmem>>, %arg2: memref<8x64xbf16, #tpu.memory_space<vmem>>, %arg3: memref<1x64xf32, #tpu.memory_space<vmem>>, %arg4: memref<64x64xbf16, #tpu.memory_space<vmem>>, %arg5: memref<1x64xf32, #tpu.memory_space<vmem>>, %arg6: memref<64x128xbf16, #tpu.memory_space<vmem>>, %arg7: memref<1x128xf32, #tpu.memory_space<vmem>>, %arg8: memref<128x128xf32, #tpu.memory_space<vmem>>) attributes {dimension_semantics = [#tpu.dimension_semantics<parallel>], iteration_bounds = array<i64: 2>, scalar_prefetch = 0 : i64, scratch_operands = 0 : i64, tpu.core_type = #tpu.core_type<tc>, window_params = [{transform_indices = @transform_0, window_bounds = array<i64: 128, 8>}, {pipeline_mode = #tpu.pipeline_mode<synchronous>, transform_indices = @transform_1, window_bounds = array<i64: 8, 64>}, {pipeline_mode = #tpu.pipeline_mode<synchronous>, transform_indices = @transform_2, window_bounds = array<i64: 1, 64>}, {pipeline_mode = #tpu.pipeline_mode<synchronous>, transform_indices = @transform_3, window_bounds = array<i64: 64, 64>}, {pipeline_mode = #tpu.pipeline_mode<synchronous>, transform_indices = @transform_4, window_bounds = array<i64: 1, 64>}, {pipeline_mode = #tpu.pipeline_mode<synchronous>, transform_indices = @transform_5, window_bounds = array<i64: 64, 128>}, {pipeline_mode = #tpu.pipeline_mode<synchronous>, transform_indices = @transform_6, window_bounds = array<i64: 1, 128>}, {transform_indices = @transform_7, window_bounds = array<i64: 128, 128>}]} {
    %c0 = arith.constant 0 : index
    %c0_0 = arith.constant 0 : index
    %0 = vector.load %arg1[%c0, %c0_0] : memref<128x8xbf16, #tpu.memory_space<vmem>>, vector<128x8xbf16>
    %c0_1 = arith.constant 0 : index
    %c0_2 = arith.constant 0 : index
    %1 = vector.load %arg2[%c0_1, %c0_2] : memref<8x64xbf16, #tpu.memory_space<vmem>>, vector<8x64xbf16>
    %cst = arith.constant dense<0.000000e+00> : vector<128x64xf32>
    %2 = tpu.matmul %0, %1, %cst {dimension_numbers = #tpu.dot_dimension_numbers<[1], [0], [0], [1], [0, 0, 1, 1], [], []>} : vector<128x8xbf16>, vector<8x64xbf16>, vector<128x64xf32> -> vector<128x64xf32>
    %c0_3 = arith.constant 0 : index
    %c0_4 = arith.constant 0 : index
    %3 = vector.load %arg3[%c0_3, %c0_4] : memref<1x64xf32, #tpu.memory_space<vmem>>, vector<1x64xf32>
    %4 = vector.broadcast %3 : vector<1x64xf32> to vector<128x64xf32>
    %5 = arith.addf %2, %4 : vector<128x64xf32>
    %cst_5 = arith.constant 0.000000e+00 : f32
    %6 = vector.broadcast %cst_5 : f32 to vector<128x64xf32>
    %7 = arith.maximumf %5, %6 : vector<128x64xf32>
    %8 = arith.truncf %7 : vector<128x64xf32> to vector<128x64xbf16>
    %c0_6 = arith.constant 0 : index
    %c0_7 = arith.constant 0 : index
    %9 = vector.load %arg4[%c0_6, %c0_7] : memref<64x64xbf16, #tpu.memory_space<vmem>>, vector<64x64xbf16>
    %cst_8 = arith.constant dense<0.000000e+00> : vector<128x64xf32>
    %10 = tpu.matmul %8, %9, %cst_8 {dimension_numbers = #tpu.dot_dimension_numbers<[1], [0], [0], [1], [0, 0, 1, 1], [], []>} : vector<128x64xbf16>, vector<64x64xbf16>, vector<128x64xf32> -> vector<128x64xf32>
    %c0_9 = arith.constant 0 : index
    %c0_10 = arith.constant 0 : index
    %11 = vector.load %arg5[%c0_9, %c0_10] : memref<1x64xf32, #tpu.memory_space<vmem>>, vector<1x64xf32>
    %12 = vector.broadcast %11 : vector<1x64xf32> to vector<128x64xf32>
    %13 = arith.addf %10, %12 : vector<128x64xf32>
    %cst_11 = arith.constant 0.000000e+00 : f32
    %14 = vector.broadcast %cst_11 : f32 to vector<128x64xf32>
    %15 = arith.maximumf %13, %14 : vector<128x64xf32>
    %16 = arith.truncf %15 : vector<128x64xf32> to vector<128x64xbf16>
    %c0_12 = arith.constant 0 : index
    %c0_13 = arith.constant 0 : index
    %17 = vector.load %arg6[%c0_12, %c0_13] : memref<64x128xbf16, #tpu.memory_space<vmem>>, vector<64x128xbf16>
    %cst_14 = arith.constant dense<0.000000e+00> : vector<128x128xf32>
    %18 = tpu.matmul %16, %17, %cst_14 {dimension_numbers = #tpu.dot_dimension_numbers<[1], [0], [0], [1], [0, 0, 1, 1], [], []>} : vector<128x64xbf16>, vector<64x128xbf16>, vector<128x128xf32> -> vector<128x128xf32>
    %c0_15 = arith.constant 0 : index
    %c0_16 = arith.constant 0 : index
    %19 = vector.load %arg7[%c0_15, %c0_16] : memref<1x128xf32, #tpu.memory_space<vmem>>, vector<1x128xf32>
    %20 = vector.broadcast %19 : vector<1x128xf32> to vector<128x128xf32>
    %21 = arith.addf %18, %20 : vector<128x128xf32>
    %c0_17 = arith.constant 0 : index
    %c0_18 = arith.constant 0 : index
    %22 = vector.load %arg8[%c0_17, %c0_18] : memref<128x128xf32, #tpu.memory_space<vmem>>, vector<128x128xf32>
    tpu.vector_store %arg8[%c0_17, %c0_18], %21 {strides = array<i32>} : memref<128x128xf32, #tpu.memory_space<vmem>>, vector<128x128xf32>,
    return
  }
  func.func @transform_0(%arg0: i32) -> (i32, i32) {
    %c0_i32 = arith.constant 0 : i32
    %c0_i32_0 = arith.constant 0 : i32
    return %arg0, %c0_i32 : i32, i32
  }
  func.func @transform_1(%arg0: i32) -> (i32, i32) {
    %c0_i32 = arith.constant 0 : i32
    %c0_i32_0 = arith.constant 0 : i32
    %c0_i32_1 = arith.constant 0 : i32
    return %c0_i32, %c0_i32_0 : i32, i32
  }
  func.func @transform_2(%arg0: i32) -> (i32, i32) {
    %c0_i32 = arith.constant 0 : i32
    %c0_i32_0 = arith.constant 0 : i32
    %c0_i32_1 = arith.constant 0 : i32
    return %c0_i32, %c0_i32_0 : i32, i32
  }
  func.func @transform_3(%arg0: i32) -> (i32, i32) {
    %c0_i32 = arith.constant 0 : i32
    %c0_i32_0 = arith.constant 0 : i32
    %c0_i32_1 = arith.constant 0 : i32
    return %c0_i32, %c0_i32_0 : i32, i32
  }
  func.func @transform_4(%arg0: i32) -> (i32, i32) {
    %c0_i32 = arith.constant 0 : i32
    %c0_i32_0 = arith.constant 0 : i32
    %c0_i32_1 = arith.constant 0 : i32
    return %c0_i32, %c0_i32_0 : i32, i32
  }
  func.func @transform_5(%arg0: i32) -> (i32, i32) {
    %c0_i32 = arith.constant 0 : i32
    %c0_i32_0 = arith.constant 0 : i32
    %c0_i32_1 = arith.constant 0 : i32
    return %c0_i32, %c0_i32_0 : i32, i32
  }
  func.func @transform_6(%arg0: i32) -> (i32, i32) {
    %c0_i32 = arith.constant 0 : i32
    %c0_i32_0 = arith.constant 0 : i32
    %c0_i32_1 = arith.constant 0 : i32
    return %c0_i32, %c0_i32_0 : i32, i32
  }
  func.func @transform_7(%arg0: i32) -> (i32, i32) {
    %c0_i32 = arith.constant 0 : i32
    %c0_i32_0 = arith.constant 0 : i32
    return %arg0, %c0_i32 : i32, i32
  }
}

</mosaic_0001>

<llo_original>
// kernel: tpu_custom_call.1
$region0: #{tpu_custom_call.1}
  #allocation0 [shape = 'u32[]', space=smem, size = 0x4, offset = 0x4, fixed_abs, tag = 'smem constant byte address 0x4 - core index']
  #allocation1 [shape = 'u32[144,128]{1,0:T(1,128)}', space=vmem, size = 0x12000, scoped, tag = 'internal scratch']
  %s0 = inlined_call_operand.vmem [shape: bf16[256,8], index: 0, kind: input, shape index: {}]
  %s1 = inlined_call_operand.vmem [shape: bf16[8,64], index: 1, kind: input, shape index: {}]
  %s2 = inlined_call_operand.vmem [shape: f32[1,64], index: 2, kind: input, shape index: {}]
  %s3 = inlined_call_operand.vmem [shape: bf16[64,64], index: 3, kind: input, shape index: {}]
  %s4 = inlined_call_operand.vmem [shape: f32[1,64], index: 4, kind: input, shape index: {}]
  %s5 = inlined_call_operand.vmem [shape: bf16[64,128], index: 5, kind: input, shape index: {}]
  %s6 = inlined_call_operand.vmem [shape: f32[1,128], index: 6, kind: input, shape index: {}]
  %s7 = inlined_call_operand.hbm [shape: f32[256,128], index: 7, kind: output, shape index: {}]
  %s8 = sld [smem:[#allocation0]]
  $region61: #{tpu_custom_call.1} parent=0
    _
  %s10 = ssub.s32 1, %s8
  %s11 = scalar_select 0, %s10, %s8
  $region1: #{tpu_custom_call.1} parent=0
    #allocation2 [shape = 'u8[131072]{0}', space=vmem, size = 0x20000, scoped, tag = 'output window, operand 0']
    #allocation3 [shape = 's32[2]{0}', space=sflag, size = 0x8, scoped, tag = 'scoped memory for tpu_custom_call.1']
    %12 = vsyncpa [#allocation3], 0
    %s13 = scalar_lea.sflag [#allocation3], 1
    %14 = vsyncpa %s13, 0
    loop: start=0, step=1, limit=4
    $region2: #{tpu_custom_call.1} parent=1 // loop_pre_header
      _
    $region3: #{tpu_custom_call.1} parent=1 // loop_header
      %s16 = sphi 0, %s20
      %p17 = scmp.ge.s32.totalorder %s16, 4
      %s26 = sphi 0, %s28
      %s29 = sphi 0, %s26
      %s30 = sphi 0, %s29
      %s46 = sphi 0, %s30
      %s50 = sphi 0, %s50
      %s52 = sphi 0, %s50
      %s53 = sphi 0, %s52
      %s67 = sphi 0, %s53
      %s71 = sphi 0, %s71
      %s73 = sphi 0, %s71
      %s74 = sphi 0, %s73
      %s88 = sphi 0, %s74
      %s92 = sphi 0, %s92
      %s94 = sphi 0, %s92
      %s95 = sphi 0, %s94
      %s109 = sphi 0, %s95
      %s113 = sphi 0, %s113
      %s115 = sphi 0, %s113
      %s116 = sphi 0, %s115
      %s130 = sphi 0, %s116
      %s134 = sphi 0, %s134
      %s136 = sphi 0, %s134
      %s137 = sphi 0, %s136
      %s151 = sphi 0, %s137
      %s155 = sphi 0, %s155
      %s157 = sphi 0, %s155
      %s158 = sphi 0, %s157
      %s172 = sphi 0, %s158
      %s178 = sphi 0, %s180
      %s181 = sphi 0, %s178
      %s182 = sphi 0, %s181
      %s198 = sphi 0, %s182
    $region4: #{tpu_custom_call.1} parent=1 // loop_header_branch
      %19 = sbr.rel (%p17) target = $region8
    $region5: #{tpu_custom_call.1} parent=1 // loop_body
      %s21 = ssub.s32 %s16, 1
      %s22 = ssub.s32 %s16, 2
      %s23 = sadd.s32 %s16, 1
      %s24 = ssub.s32 %s16, %s23
      %p25 = scmp.eq.s32.totalorder %s24, 0
      %s27 = sadd.s32 %s26, 1
      %s28 = scalar_select %p25, %s26, %s27
      %p31 = pneg %p25
      %p32 = scmp.eq.s32.totalorder %s16, 1
      %p33 = por %p31, %p32
      %p34 = scmp.ne.s32.totalorder %s26, %s29
      %p35 = scmp.eq.s32.totalorder %s16, 0
      %p36 = por %p34, %p35
      %p37 = scmp.ne.s32.totalorder %s26, %s29
      %p38 = scmp.eq.s32.totalorder %s21, 1
      %p39 = por %p37, %p38
      %p40 = scmp.ne.s32.totalorder %s29, %s30
      %p41 = scmp.eq.s32.totalorder %s21, 0
      %p42 = por %p40, %p41
      %p43 = scmp.ne.s32.totalorder %s29, %s30
      %p44 = scmp.eq.s32.totalorder %s22, 1
      %p45 = por %p43, %p44
      %p47 = scmp.ne.s32.totalorder %s30, %s46
      %p48 = scmp.eq.s32.totalorder %s22, 0
      %p49 = por %p47, %p48
      %s51 = sadd.s32 %s50, 1
      %p54 = scmp.eq.s32.totalorder %s16, 1
      %p55 = scmp.ne.s32.totalorder %s50, %s52
      %p56 = scmp.eq.s32.totalorder %s16, 0
      %p57 = por %p55, %p56
      %p58 = scmp.ne.s32.totalorder %s50, %s52
      %p59 = scmp.eq.s32.totalorder %s21, 1
      %p60 = por %p58, %p59
      %p61 = scmp.ne.s32.totalorder %s52, %s53
      %p62 = scmp.eq.s32.totalorder %s21, 0
      %p63 = por %p61, %p62
      %p64 = scmp.ne.s32.totalorder %s52, %s53
      %p65 = scmp.eq.s32.totalorder %s22, 1
      %p66 = por %p64, %p65
      %p68 = scmp.ne.s32.totalorder %s53, %s67
      %p69 = scmp.eq.s32.totalorder %s22, 0
      %p70 = por %p68, %p69
      %s72 = sadd.s32 %s71, 1
      %p75 = scmp.eq.s32.totalorder %s16, 1
      %p76 = scmp.ne.s32.totalorder %s71, %s73
      %p77 = scmp.eq.s32.totalorder %s16, 0
      %p78 = por %p76, %p77
      %p79 = scmp.ne.s32.totalorder %s71, %s73
      %p80 = scmp.eq.s32.totalorder %s21, 1
      %p81 = por %p79, %p80
      %p82 = scmp.ne.s32.totalorder %s73, %s74
      %p83 = scmp.eq.s32.totalorder %s21, 0
      %p84 = por %p82, %p83
      %p85 = scmp.ne.s32.totalorder %s73, %s74
      %p86 = scmp.eq.s32.totalorder %s22, 1
      %p87 = por %p85, %p86
      %p89 = scmp.ne.s32.totalorder %s74, %s88
      %p90 = scmp.eq.s32.totalorder %s22, 0
      %p91 = por %p89, %p90
      %s93 = sadd.s32 %s92, 1
      %p96 = scmp.eq.s32.totalorder %s16, 1
      %p97 = scmp.ne.s32.totalorder %s92, %s94
      %p98 = scmp.eq.s32.totalorder %s16, 0
      %p99 = por %p97, %p98
      %p100 = scmp.ne.s32.totalorder %s92, %s94
      %p101 = scmp.eq.s32.totalorder %s21, 1
      %p102 = por %p100, %p101
      %p103 = scmp.ne.s32.totalorder %s94, %s95
      %p104 = scmp.eq.s32.totalorder %s21, 0
      %p105 = por %p103, %p104
      %p106 = scmp.ne.s32.totalorder %s94, %s95
      %p107 = scmp.eq.s32.totalorder %s22, 1
      %p108 = por %p106, %p107
      %p110 = scmp.ne.s32.totalorder %s95, %s109
      %p111 = scmp.eq.s32.totalorder %s22, 0
      %p112 = por %p110, %p111
      %s114 = sadd.s32 %s113, 1
      %p117 = scmp.eq.s32.totalorder %s16, 1
      %p118 = scmp.ne.s32.totalorder %s113, %s115
      %p119 = scmp.eq.s32.totalorder %s16, 0
      %p120 = por %p118, %p119
      %p121 = scmp.ne.s32.totalorder %s113, %s115
      %p122 = scmp.eq.s32.totalorder %s21, 1
      %p123 = por %p121, %p122
      %p124 = scmp.ne.s32.totalorder %s115, %s116
      %p125 = scmp.eq.s32.totalorder %s21, 0
      %p126 = por %p124, %p125
      %p127 = scmp.ne.s32.totalorder %s115, %s116
      %p128 = scmp.eq.s32.totalorder %s22, 1
      %p129 = por %p127, %p128
      %p131 = scmp.ne.s32.totalorder %s116, %s130
      %p132 = scmp.eq.s32.totalorder %s22, 0
      %p133 = por %p131, %p132
      %s135 = sadd.s32 %s134, 1
      %p138 = scmp.eq.s32.totalorder %s16, 1
      %p139 = scmp.ne.s32.totalorder %s134, %s136
      %p140 = scmp.eq.s32.totalorder %s16, 0
      %p141 = por %p139, %p140
      %p142 = scmp.ne.s32.totalorder %s134, %s136
      %p143 = scmp.eq.s32.totalorder %s21, 1
      %p144 = por %p142, %p143
      %p145 = scmp.ne.s32.totalorder %s136, %s137
      %p146 = scmp.eq.s32.totalorder %s21, 0
      %p147 = por %p145, %p146
      %p148 = scmp.ne.s32.totalorder %s136, %s137
      %p149 = scmp.eq.s32.totalorder %s22, 1
      %p150 = por %p148, %p149
      %p152 = scmp.ne.s32.totalorder %s137, %s151
      %p153 = scmp.eq.s32.totalorder %s22, 0
      %p154 = por %p152, %p153
      %s156 = sadd.s32 %s155, 1
      %p159 = scmp.eq.s32.totalorder %s16, 1
      %p160 = scmp.ne.s32.totalorder %s155, %s157
      %p161 = scmp.eq.s32.totalorder %s16, 0
      %p162 = por %p160, %p161
      %p163 = scmp.ne.s32.totalorder %s155, %s157
      %p164 = scmp.eq.s32.totalorder %s21, 1
      %p165 = por %p163, %p164
      %p166 = scmp.ne.s32.totalorder %s157, %s158
      %p167 = scmp.eq.s32.totalorder %s21, 0
      %p168 = por %p166, %p167
      %p169 = scmp.ne.s32.totalorder %s157, %s158
      %p170 = scmp.eq.s32.totalorder %s22, 1
      %p171 = por %p169, %p170
      %p173 = scmp.ne.s32.totalorder %s158, %s172
      %p174 = scmp.eq.s32.totalorder %s22, 0
      %p175 = por %p173, %p174
      %s176 = ssub.s32 %s16, %s23
      %p177 = scmp.eq.s32.totalorder %s176, 0
      %s179 = sadd.s32 %s178, 1
      %s180 = scalar_select %p177, %s178, %s179
      %p183 = pneg %p177
      %p184 = scmp.eq.s32.totalorder %s16, 1
      %p185 = por %p183, %p184
      %p186 = scmp.ne.s32.totalorder %s178, %s181
      %p187 = scmp.eq.s32.totalorder %s16, 0
      %p188 = por %p186, %p187
      %p189 = scmp.ne.s32.totalorder %s178, %s181
      %p190 = scmp.eq.s32.totalorder %s21, 1
      %p191 = por %p189, %p190
      %p192 = scmp.ne.s32.totalorder %s181, %s182
      %p193 = scmp.eq.s32.totalorder %s21, 0
      %p194 = por %p192, %p193
      %p195 = scmp.ne.s32.totalorder %s181, %s182
      %p196 = scmp.eq.s32.totalorder %s22, 1
      %p197 = por %p195, %p196
      %p199 = scmp.ne.s32.totalorder %s182, %s198
      %p200 = scmp.eq.s32.totalorder %s22, 0
      %p201 = por %p199, %p200
      %p202 = scmp.le.s32.totalorder 1, %s16
      %p203 = scmp.lt.s32.totalorder %s16, 3
      %p204 = pnand %p202, %p203
      %p205 = pneg %p204
      // Predicated region
      $region9: #{tpu_custom_call.1} parent=5 // pred_check
        _
      $region10: #{tpu_custom_call.1} parent=5 // pred_check_branch
        %207 = sbr.rel (%p204) target = $region12
      $region11: #{tpu_custom_call.1} parent=5 // pred_region
        %s208 = ssub.s32 %s16, 1
        // Predicated region
        $region13: #{tpu_custom_call.1} parent=11 // pred_check
          %p209 = pneg %p63
        $region14: #{tpu_custom_call.1} parent=11 // pred_check_branch
          %211 = sbr.rel (%p209) target = $region16
        $region15: #{tpu_custom_call.1} parent=11 // pred_region
          _
        $region16: #{tpu_custom_call.1} parent=11 // pred_fallthru
          _
        // Predicated region
        $region17: #{tpu_custom_call.1} parent=11 // pred_check
          %p212 = pneg %p84
        $region18: #{tpu_custom_call.1} parent=11 // pred_check_branch
          %214 = sbr.rel (%p212) target = $region20
        $region19: #{tpu_custom_call.1} parent=11 // pred_region
          _
        $region20: #{tpu_custom_call.1} parent=11 // pred_fallthru
          _
        // Predicated region
        $region21: #{tpu_custom_call.1} parent=11 // pred_check
          %p215 = pneg %p105
        $region22: #{tpu_custom_call.1} parent=11 // pred_check_branch
          %217 = sbr.rel (%p215) target = $region24
        $region23: #{tpu_custom_call.1} parent=11 // pred_region
          _
        $region24: #{tpu_custom_call.1} parent=11 // pred_fallthru
          _
        // Predicated region
        $region25: #{tpu_custom_call.1} parent=11 // pred_check
          %p218 = pneg %p126
        $region26: #{tpu_custom_call.1} parent=11 // pred_check_branch
          %220 = sbr.rel (%p218) target = $region28
        $region27: #{tpu_custom_call.1} parent=11 // pred_region
          _
        $region28: #{tpu_custom_call.1} parent=11 // pred_fallthru
          _
        // Predicated region
        $region29: #{tpu_custom_call.1} parent=11 // pred_check
          %p221 = pneg %p147
        $region30: #{tpu_custom_call.1} parent=11 // pred_check_branch
          %223 = sbr.rel (%p221) target = $region32
        $region31: #{tpu_custom_call.1} parent=11 // pred_region
          _
        $region32: #{tpu_custom_call.1} parent=11 // pred_fallthru
          _
        // Predicated region
        $region33: #{tpu_custom_call.1} parent=11 // pred_check
          %p224 = pneg %p168
        $region34: #{tpu_custom_call.1} parent=11 // pred_check_branch
          %226 = sbr.rel (%p224) target = $region36
        $region35: #{tpu_custom_call.1} parent=11 // pred_region
          _
        $region36: #{tpu_custom_call.1} parent=11 // pred_fallthru
          _
      $region12: #{tpu_custom_call.1} parent=5 // pred_fallthru
        _
      %p227 = scmp.lt.s32.totalorder %s16, 2
      // Predicated region
      $region37: #{tpu_custom_call.1} parent=5 // pred_check
        %p228 = pneg %p227
      $region38: #{tpu_custom_call.1} parent=5 // pred_check_branch
        %230 = sbr.rel (%p228) target = $region40
      $region39: #{tpu_custom_call.1} parent=5 // pred_region
        // Predicated region
        $region41: #{tpu_custom_call.1} parent=39 // pred_check
          %p231 = pneg %p36
        $region42: #{tpu_custom_call.1} parent=39 // pred_check_branch
          %233 = sbr.rel (%p231) target = $region44
        $region43: #{tpu_custom_call.1} parent=39 // pred_region
          %s234 = smul.u32 16, %s16
          %p235 = scmp.lt.s32.totalorder %s234, 31
          %s236 = scalar_select %p235, %s234, 31
          %s237 = smul.addr %s236, 4
          %s238 = scalar_lea.vmem %s0, %s237
          %s239 = smul.u32 16, %s16
        $region44: #{tpu_custom_call.1} parent=39 // pred_fallthru
          _
      $region40: #{tpu_custom_call.1} parent=5 // pred_fallthru
        _
      %p240 = scmp.le.s32.totalorder 1, %s16
      %p241 = scmp.lt.s32.totalorder %s16, 3
      %p242 = pnand %p240, %p241
      %p243 = pneg %p242
      // Predicated region
      $region45: #{tpu_custom_call.1} parent=5 // pred_check
        _
      $region46: #{tpu_custom_call.1} parent=5 // pred_check_branch
        %245 = sbr.rel (%p242) target = $region48
      $region47: #{tpu_custom_call.1} parent=5 // pred_region
        %s246 = ssub.s32 %s16, 1
        %s247 = smul.u32 16, %s21
        %p248 = scmp.lt.s32.totalorder %s247, 31
        %s249 = scalar_select %p248, %s247, 31
        %s250 = smul.addr %s249, 4
        %s251 = scalar_lea.vmem %s0, %s250
        %p252 = pneg %p42
        %p253 = pneg %p39
        %p254 = pneg %p63
        %p255 = pneg %p60
        %p256 = pneg %p84
        %p257 = pneg %p81
        %p258 = pneg %p105
        %p259 = pneg %p102
        %p260 = pneg %p126
        %p261 = pneg %p123
        %p262 = pneg %p147
        %p263 = pneg %p144
        %p264 = pneg %p168
        %p265 = pneg %p165
        %p266 = pneg %p194
        %p267 = pneg %p191
        %s268 = sand.u32 %s181, 1
        %s269 = scalar_lea.sflag [#allocation3], %s268
        %s270 = sand.u32 %s181, 1
        %s271 = smul.addr %s270, 128
        %s272 = scalar_lea.vmem [#allocation2], %s271
        %s273 = smul.u32 16, %s21
        %p274 = scmp.lt.s32.totalorder %s273, 31
        %s275 = scalar_select %p274, %s273, 31
        %s276 = smul.addr %s275, 4
        %s277 = scalar_lea.vmem %s0, %s276
        %s278 = smul.u32 16, %s21
        %s279 = smul.u32 16, %s21
        %v281 = vld [vmem:[%s277] sm:$0xf]
        %v282 = vld [vmem:[%s277 + $0x4] sm:$0xf]
        %v283 = vld [vmem:[%s277 + $0x8] sm:$0xf]
        %v284 = vld [vmem:[%s277 + $0xc] sm:$0xf]
        %v285 = vld [vmem:[%s277 + $0x10] sm:$0xf]
        %v286 = vld [vmem:[%s277 + $0x14] sm:$0xf]
        %v287 = vld [vmem:[%s277 + $0x18] sm:$0xf]
        %v288 = vld [vmem:[%s277 + $0x1c] sm:$0xf]
        %v289 = vld [vmem:[%s277 + $0x20] sm:$0xf]
        %v290 = vld [vmem:[%s277 + $0x24] sm:$0xf]
        %v291 = vld [vmem:[%s277 + $0x28] sm:$0xf]
        %v292 = vld [vmem:[%s277 + $0x2c] sm:$0xf]
        %v293 = vld [vmem:[%s277 + $0x30] sm:$0xf]
        %v294 = vld [vmem:[%s277 + $0x34] sm:$0xf]
        %v295 = vld [vmem:[%s277 + $0x38] sm:$0xf]
        %v296 = vld [vmem:[%s277 + $0x3c] sm:$0xf]
        %v297 = vld [vmem:[%s1] sm:$0xf]
        %v298 = vld [vmem:[%s2] sm:$0x1]
        %v300 = vlaneseq
        %v301 = vshrl.u32 %v300, 7
        %v302 = vsub.s32 0, %v301
        %v303 = vrot.slane %v298, %v302
        %v321 = vunpack.c.l.b16 %v281
        %v322 = vunpack.c.l.b16 %v282
        %v323 = vunpack.c.l.b16 %v283
        %v324 = vunpack.c.l.b16 %v284
        %v325 = vunpack.c.l.b16 %v285
        %v326 = vunpack.c.l.b16 %v286
        %v327 = vunpack.c.l.b16 %v287
        %v328 = vunpack.c.l.b16 %v288
        %v329 = vunpack.c.l.b16 %v289
        %v330 = vunpack.c.l.b16 %v290
        %v331 = vunpack.c.l.b16 %v291
        %v332 = vunpack.c.l.b16 %v292
        %v333 = vunpack.c.l.b16 %v293
        %v334 = vunpack.c.l.b16 %v294
        %v335 = vunpack.c.l.b16 %v295
        %v336 = vunpack.c.l.b16 %v296
        %v337 = vpack.c.b16 %v322, %v321
        %v338 = vpack.c.b16 %v324, %v323
        %v339 = vpack.c.b16 %v326, %v325
        %v340 = vpack.c.b16 %v328, %v327
        %v341 = vpack.c.b16 %v330, %v329
        %v342 = vpack.c.b16 %v332, %v331
        %v343 = vpack.c.b16 %v334, %v333
        %v344 = vpack.c.b16 %v336, %v335
        %vm345 = vcmask 64512
        %v347 = vsel %vm345, %v337, 0
        %v350 = vsel %vm345, %v338, 0
        %v353 = vsel %vm345, %v339, 0
        %v356 = vsel %vm345, %v340, 0
        %v359 = vsel %vm345, %v341, 0
        %v362 = vsel %vm345, %v342, 0
        %v365 = vsel %vm345, %v343, 0
        %v368 = vsel %vm345, %v344, 0
        %vm370 = vcmask 1043456
        %v372 = vsel %vm370, %v297, 0
        %374 = vmatprep.subr.bf16.mxu0 0
        %375 = vmatpush1.bf16.msra.mxu0 0
        %376 = vmatprep.subr.bf16.mxu0 0
        %377 = vmatpush1.bf16.msra.mxu0 0
        %378 = vmatprep.subr.bf16.mxu0 0
        %379 = vmatpush1.bf16.msra.mxu0 0
        %380 = vmatprep.subr.bf16.mxu0 0
        %381 = vmatpush1.bf16.msra.mxu0 0
        %382 = vmatprep.subr.bf16.mxu0 0
        %383 = vmatpush1.bf16.msra.mxu0 0
        %384 = vmatprep.subr.bf16.mxu0 0
        %385 = vmatpush1.bf16.msra.mxu0 0
        %386 = vmatprep.subr.bf16.mxu0 0
        %387 = vmatpush1.bf16.msra.mxu0 0
        %388 = vmatprep.subr.bf16.mxu0 0
        %389 = vmatpush1.bf16.msra.mxu0 %v372
        %390 = vmatprep.subr.bf16.mxu0 0
        %391 = vmatpush2.bf16.msra.mxu0 0
        %392 = vmatprep.subr.bf16.mxu0 0
        %393 = vmatpush2.bf16.msra.mxu0 0
        %394 = vmatprep.subr.bf16.mxu0 0
        %395 = vmatpush2.bf16.msra.mxu0 0
        %396 = vmatprep.subr.bf16.mxu0 0
        %397 = vmatpush2.bf16.msra.mxu0 0
        %398 = vmatprep.subr.bf16.mxu0 0
        %399 = vmatpush2.bf16.msra.mxu0 0
        %400 = vmatprep.subr.bf16.mxu0 0
        %401 = vmatpush2.bf16.msra.mxu0 0
        %402 = vmatprep.subr.bf16.mxu0 0
        %403 = vmatpush2.bf16.msra.mxu0 0
        %404 = vmatprep.subr.bf16.mxu0 0
        %405 = vmatpush2.bf16.msra.mxu0 0
        %406 = vmatprep.mubr.bf16.mxu0 0
        %407 = vmatmul.mubr.bf16.gmra.mxu0 %v347
        %v408 = vpop.f32.mrf.mxu0
        %v409 = vadd.f32 %v303, %v408
        %v410 = vpop.f32.mrf.mxu0
        %v411 = vpop.f32.mrf.mxu0
        %v412 = vadd.f32 %v303, %v411
        %v413 = vpop.f32.mrf.mxu0
        %414 = vmatprep.mubr.bf16.mxu0 0
        %415 = vmatmul.mubr.bf16.gmra.mxu0 %v350
        %v416 = vpop.f32.mrf.mxu0
        %v417 = vadd.f32 %v303, %v416
        %v418 = vpop.f32.mrf.mxu0
        %v419 = vpop.f32.mrf.mxu0
        %v420 = vadd.f32 %v303, %v419
        %v421 = vpop.f32.mrf.mxu0
        %422 = vmatprep.mubr.bf16.mxu0 0
        %423 = vmatmul.mubr.bf16.gmra.mxu0 %v353
        %v424 = vpop.f32.mrf.mxu0
        %v425 = vadd.f32 %v303, %v424
        %v426 = vpop.f32.mrf.mxu0
        %v427 = vpop.f32.mrf.mxu0
        %v428 = vadd.f32 %v303, %v427
        %v429 = vpop.f32.mrf.mxu0
        %430 = vmatprep.mubr.bf16.mxu0 0
        %431 = vmatmul.mubr.bf16.gmra.mxu0 %v356
        %v432 = vpop.f32.mrf.mxu0
        %v433 = vadd.f32 %v303, %v432
        %v434 = vpop.f32.mrf.mxu0
        %v435 = vpop.f32.mrf.mxu0
        %v436 = vadd.f32 %v303, %v435
        %v437 = vpop.f32.mrf.mxu0
        %438 = vmatprep.mubr.bf16.mxu0 0
        %439 = vmatmul.mubr.bf16.gmra.mxu0 %v359
        %v440 = vpop.f32.mrf.mxu0
        %v441 = vadd.f32 %v303, %v440
        %v442 = vpop.f32.mrf.mxu0
        %v443 = vpop.f32.mrf.mxu0
        %v444 = vadd.f32 %v303, %v443
        %v445 = vpop.f32.mrf.mxu0
        %446 = vmatprep.mubr.bf16.mxu0 0
        %447 = vmatmul.mubr.bf16.gmra.mxu0 %v362
        %v448 = vpop.f32.mrf.mxu0
        %v449 = vadd.f32 %v303, %v448
        %v450 = vpop.f32.mrf.mxu0
        %v451 = vpop.f32.mrf.mxu0
        %v452 = vadd.f32 %v303, %v451
        %v453 = vpop.f32.mrf.mxu0
        %454 = vmatprep.mubr.bf16.mxu0 0
        %455 = vmatmul.mubr.bf16.gmra.mxu0 %v365
        %v456 = vpop.f32.mrf.mxu0
        %v457 = vadd.f32 %v303, %v456
        %v458 = vpop.f32.mrf.mxu0
        %v459 = vpop.f32.mrf.mxu0
        %v460 = vadd.f32 %v303, %v459
        %v461 = vpop.f32.mrf.mxu0
        %462 = vmatprep.mubr.bf16.mxu0 0
        %463 = vmatmul.mubr.bf16.gmra.mxu0 %v368
        %v464 = vpop.f32.mrf.mxu0
        %v465 = vadd.f32 %v303, %v464
        %v466 = vpop.f32.mrf.mxu0
        %v467 = vpop.f32.mrf.mxu0
        %v468 = vadd.f32 %v303, %v467
        %v469 = vpop.f32.mrf.mxu0
        %470 = vdwg.mxu0
        %v471 = vmax.f32 %v409, 0.0
        %v472 = vmax.f32 %v412, 0.0
        %v473 = vmax.f32 %v417, 0.0
        %v474 = vmax.f32 %v420, 0.0
        %v475 = vmax.f32 %v425, 0.0
        %v476 = vmax.f32 %v428, 0.0
        %v477 = vmax.f32 %v433, 0.0
        %v478 = vmax.f32 %v436, 0.0
        %v479 = vmax.f32 %v441, 0.0
        %v480 = vmax.f32 %v444, 0.0
        %v481 = vmax.f32 %v449, 0.0
        %v482 = vmax.f32 %v452, 0.0
        %v483 = vmax.f32 %v457, 0.0
        %v484 = vmax.f32 %v460, 0.0
        %v485 = vmax.f32 %v465, 0.0
        %v486 = vmax.f32 %v468, 0.0
        %v487 = vpack.c.bf16 %v472, %v471
        %v488 = vpack.c.bf16 %v474, %v473
        %v489 = vpack.c.bf16 %v476, %v475
        %v490 = vpack.c.bf16 %v478, %v477
        %v491 = vpack.c.bf16 %v480, %v479
        %v492 = vpack.c.bf16 %v482, %v481
        %v493 = vpack.c.bf16 %v484, %v483
        %v494 = vpack.c.bf16 %v486, %v485
        %v495 = vld [vmem:[%s3] sm:$0xf]
        %v496 = vld [vmem:[%s3 + $0x4] sm:$0xf]
        %v497 = vld [vmem:[%s3 + $0x8] sm:$0xf]
        %v498 = vld [vmem:[%s3 + $0xc] sm:$0xf]
        %v499 = vld [vmem:[%s3 + $0x10] sm:$0xf]
        %v500 = vld [vmem:[%s3 + $0x14] sm:$0xf]
        %v501 = vld [vmem:[%s3 + $0x18] sm:$0xf]
        %v502 = vld [vmem:[%s3 + $0x1c] sm:$0xf]
        %v503 = vld [vmem:[%s4] sm:$0x1]
        %v505 = vlaneseq
        %v506 = vshrl.u32 %v505, 7
        %v507 = vsub.s32 0, %v506
        %v508 = vrot.slane %v503, %v507
        %v518 = vunpack.c.l.b16 %v495
        %v519 = vunpack.c.l.b16 %v496
        %v520 = vunpack.c.l.b16 %v497
        %v521 = vunpack.c.l.b16 %v498
        %v522 = vunpack.c.l.b16 %v499
        %v523 = vunpack.c.l.b16 %v500
        %v524 = vunpack.c.l.b16 %v501
        %v525 = vunpack.c.l.b16 %v502
        %v526 = vpack.c.b16 %v519, %v518
        %v527 = vpack.c.b16 %v521, %v520
        %v528 = vpack.c.b16 %v523, %v522
        %v529 = vpack.c.b16 %v525, %v524
        %vm534 = vcmask 523264
        %v536 = vsel %vm534, %v487, 0
        %v539 = vsel %vm534, %v488, 0
        %v542 = vsel %vm534, %v489, 0
        %v545 = vsel %vm534, %v490, 0
        %v548 = vsel %vm534, %v491, 0
        %v551 = vsel %vm534, %v492, 0
        %v554 = vsel %vm534, %v493, 0
        %v557 = vsel %vm534, %v494, 0
        %559 = vmatprep.subr.bf16.mxu0 0
        %560 = vmatpush1.bf16.msra.mxu0 0
        %561 = vmatprep.subr.bf16.mxu0 0
        %562 = vmatpush1.bf16.msra.mxu0 0
        %563 = vmatprep.subr.bf16.mxu0 0
        %564 = vmatpush1.bf16.msra.mxu0 0
        %565 = vmatprep.subr.bf16.mxu0 0
        %566 = vmatpush1.bf16.msra.mxu0 0
        %567 = vmatprep.subr.bf16.mxu0 0
        %568 = vmatpush1.bf16.msra.mxu0 %v529
        %569 = vmatprep.subr.bf16.mxu0 0
        %570 = vmatpush1.bf16.msra.mxu0 %v528
        %571 = vmatprep.subr.bf16.mxu0 0
        %572 = vmatpush1.bf16.msra.mxu0 %v527
        %573 = vmatprep.subr.bf16.mxu0 0
        %574 = vmatpush1.bf16.msra.mxu0 %v526
        %575 = vmatprep.subr.bf16.mxu0 0
        %576 = vmatpush2.bf16.msra.mxu0 0
        %577 = vmatprep.subr.bf16.mxu0 0
        %578 = vmatpush2.bf16.msra.mxu0 0
        %579 = vmatprep.subr.bf16.mxu0 0
        %580 = vmatpush2.bf16.msra.mxu0 0
        %581 = vmatprep.subr.bf16.mxu0 0
        %582 = vmatpush2.bf16.msra.mxu0 0
        %583 = vmatprep.subr.bf16.mxu0 0
        %584 = vmatpush2.bf16.msra.mxu0 0
        %585 = vmatprep.subr.bf16.mxu0 0
        %586 = vmatpush2.bf16.msra.mxu0 0
        %587 = vmatprep.subr.bf16.mxu0 0
        %588 = vmatpush2.bf16.msra.mxu0 0
        %589 = vmatprep.subr.bf16.mxu0 0
        %590 = vmatpush2.bf16.msra.mxu0 0
        %591 = vmatprep.mubr.bf16.mxu0 0
        %592 = vmatmul.mubr.bf16.gmra.mxu0 %v536
        %v593 = vpop.f32.mrf.mxu0
        %v594 = vadd.f32 %v508, %v593
        %v595 = vpop.f32.mrf.mxu0
        %v596 = vpop.f32.mrf.mxu0
        %v597 = vadd.f32 %v508, %v596
        %v598 = vpop.f32.mrf.mxu0
        %599 = vmatprep.mubr.bf16.mxu0 0
        %600 = vmatmul.mubr.bf16.gmra.mxu0 %v539
        %v601 = vpop.f32.mrf.mxu0
        %v602 = vadd.f32 %v508, %v601
        %v603 = vpop.f32.mrf.mxu0
        %v604 = vpop.f32.mrf.mxu0
        %v605 = vadd.f32 %v508, %v604
        %v606 = vpop.f32.mrf.mxu0
        %607 = vmatprep.mubr.bf16.mxu0 0
        %608 = vmatmul.mubr.bf16.gmra.mxu0 %v542
        %v609 = vpop.f32.mrf.mxu0
        %v610 = vadd.f32 %v508, %v609
        %v611 = vpop.f32.mrf.mxu0
        %v612 = vpop.f32.mrf.mxu0
        %v613 = vadd.f32 %v508, %v612
        %v614 = vpop.f32.mrf.mxu0
        %615 = vmatprep.mubr.bf16.mxu0 0
        %616 = vmatmul.mubr.bf16.gmra.mxu0 %v545
        %v617 = vpop.f32.mrf.mxu0
        %v618 = vadd.f32 %v508, %v617
        %v619 = vpop.f32.mrf.mxu0
        %v620 = vpop.f32.mrf.mxu0
        %v621 = vadd.f32 %v508, %v620
        %v622 = vpop.f32.mrf.mxu0
        %623 = vmatprep.mubr.bf16.mxu0 0
        %624 = vmatmul.mubr.bf16.gmra.mxu0 %v548
        %v625 = vpop.f32.mrf.mxu0
        %v626 = vadd.f32 %v508, %v625
        %v627 = vpop.f32.mrf.mxu0
        %v628 = vpop.f32.mrf.mxu0
        %v629 = vadd.f32 %v508, %v628
        %v630 = vpop.f32.mrf.mxu0
        %631 = vmatprep.mubr.bf16.mxu0 0
        %632 = vmatmul.mubr.bf16.gmra.mxu0 %v551
        %v633 = vpop.f32.mrf.mxu0
        %v634 = vadd.f32 %v508, %v633
        %v635 = vpop.f32.mrf.mxu0
        %v636 = vpop.f32.mrf.mxu0
        %v637 = vadd.f32 %v508, %v636
        %v638 = vpop.f32.mrf.mxu0
        %639 = vmatprep.mubr.bf16.mxu0 0
        %640 = vmatmul.mubr.bf16.gmra.mxu0 %v554
        %v641 = vpop.f32.mrf.mxu0
        %v642 = vadd.f32 %v508, %v641
        %v643 = vpop.f32.mrf.mxu0
        %v644 = vpop.f32.mrf.mxu0
        %v645 = vadd.f32 %v508, %v644
        %v646 = vpop.f32.mrf.mxu0
        %647 = vmatprep.mubr.bf16.mxu0 0
        %648 = vmatmul.mubr.bf16.gmra.mxu0 %v557
        %v649 = vpop.f32.mrf.mxu0
        %v650 = vadd.f32 %v508, %v649
        %v651 = vpop.f32.mrf.mxu0
        %v652 = vpop.f32.mrf.mxu0
        %v653 = vadd.f32 %v508, %v652
        %v654 = vpop.f32.mrf.mxu0
        %655 = vdwg.mxu0
        %v656 = vmax.f32 %v594, 0.0
        %v657 = vmax.f32 %v597, 0.0
        %v658 = vmax.f32 %v602, 0.0
        %v659 = vmax.f32 %v605, 0.0
        %v660 = vmax.f32 %v610, 0.0
        %v661 = vmax.f32 %v613, 0.0
        %v662 = vmax.f32 %v618, 0.0
        %v663 = vmax.f32 %v621, 0.0
        %v664 = vmax.f32 %v626, 0.0
        %v665 = vmax.f32 %v629, 0.0
        %v666 = vmax.f32 %v634, 0.0
        %v667 = vmax.f32 %v637, 0.0
        %v668 = vmax.f32 %v642, 0.0
        %v669 = vmax.f32 %v645, 0.0
        %v670 = vmax.f32 %v650, 0.0
        %v671 = vmax.f32 %v653, 0.0
        %v672 = vpack.c.bf16 %v657, %v656
        %v673 = vpack.c.bf16 %v659, %v658
        %v674 = vpack.c.bf16 %v661, %v660
        %v675 = vpack.c.bf16 %v663, %v662
        %v676 = vpack.c.bf16 %v665, %v664
        %v677 = vpack.c.bf16 %v667, %v666
        %v678 = vpack.c.bf16 %v669, %v668
        %v679 = vpack.c.bf16 %v671, %v670
        %v680 = vld [vmem:[%s5] sm:$0xf]
        %v681 = vld [vmem:[%s5 + $0x4] sm:$0xf]
        %v682 = vld [vmem:[%s5 + $0x8] sm:$0xf]
        %v683 = vld [vmem:[%s5 + $0xc] sm:$0xf]
        %v684 = vld [vmem:[%s5 + $0x10] sm:$0xf]
        %v685 = vld [vmem:[%s5 + $0x14] sm:$0xf]
        %v686 = vld [vmem:[%s5 + $0x18] sm:$0xf]
        %v687 = vld [vmem:[%s5 + $0x1c] sm:$0xf]
        %v688 = vld [vmem:[%s6] sm:$0x1]
        %v690 = vlaneseq
        %v691 = vshrl.u32 %v690, 7
        %v692 = vsub.s32 0, %v691
        %v693 = vrot.slane %v688, %v692
        %v703 = vunpack.c.l.b16 %v680
        %v704 = vunpack.c.l.b16 %v681
        %v705 = vunpack.c.l.b16 %v682
        %v706 = vunpack.c.l.b16 %v683
        %v707 = vunpack.c.l.b16 %v684
        %v708 = vunpack.c.l.b16 %v685
        %v709 = vunpack.c.l.b16 %v686
        %v710 = vunpack.c.l.b16 %v687
        %v711 = vpack.c.b16 %v704, %v703
        %v712 = vpack.c.b16 %v706, %v705
        %v713 = vpack.c.b16 %v708, %v707
        %v714 = vpack.c.b16 %v710, %v709
        %v720 = vsel %vm534, %v672, 0
        %v723 = vsel %vm534, %v673, 0
        %v726 = vsel %vm534, %v674, 0
        %v729 = vsel %vm534, %v675, 0
        %v732 = vsel %vm534, %v676, 0
        %v735 = vsel %vm534, %v677, 0
        %v738 = vsel %vm534, %v678, 0
        %v741 = vsel %vm534, %v679, 0
        %743 = vmatprep.subr.bf16.mxu0 0
        %744 = vmatpush1.bf16.msra.mxu0 0
        %745 = vmatprep.subr.bf16.mxu0 0
        %746 = vmatpush1.bf16.msra.mxu0 0
        %747 = vmatprep.subr.bf16.mxu0 0
        %748 = vmatpush1.bf16.msra.mxu0 0
        %749 = vmatprep.subr.bf16.mxu0 0
        %750 = vmatpush1.bf16.msra.mxu0 0
        %751 = vmatprep.subr.bf16.mxu0 0
        %752 = vmatpush1.bf16.msra.mxu0 %v714
        %753 = vmatprep.subr.bf16.mxu0 0
        %754 = vmatpush1.bf16.msra.mxu0 %v713
        %755 = vmatprep.subr.bf16.mxu0 0
        %756 = vmatpush1.bf16.msra.mxu0 %v712
        %757 = vmatprep.subr.bf16.mxu0 0
        %758 = vmatpush1.bf16.msra.mxu0 %v711
        %759 = vmatprep.subr.bf16.mxu0 0
        %760 = vmatpush2.bf16.msra.mxu0 0
        %761 = vmatprep.subr.bf16.mxu0 0
        %762 = vmatpush2.bf16.msra.mxu0 0
        %763 = vmatprep.subr.bf16.mxu0 0
        %764 = vmatpush2.bf16.msra.mxu0 0
        %765 = vmatprep.subr.bf16.mxu0 0
        %766 = vmatpush2.bf16.msra.mxu0 0
        %767 = vmatprep.subr.bf16.mxu0 0
        %768 = vmatpush2.bf16.msra.mxu0 0
        %769 = vmatprep.subr.bf16.mxu0 0
        %770 = vmatpush2.bf16.msra.mxu0 0
        %771 = vmatprep.subr.bf16.mxu0 0
        %772 = vmatpush2.bf16.msra.mxu0 0
        %773 = vmatprep.subr.bf16.mxu0 0
        %774 = vmatpush2.bf16.msra.mxu0 0
        %775 = vmatprep.mubr.bf16.mxu0 0
        %776 = vmatmul.mubr.bf16.gmra.mxu0 %v720
        %v777 = vpop.f32.mrf.mxu0
        %v778 = vadd.f32 %v693, %v777
        %v779 = vpop.f32.mrf.mxu0
        %v780 = vpop.f32.mrf.mxu0
        %v781 = vadd.f32 %v693, %v780
        %v782 = vpop.f32.mrf.mxu0
        %783 = vmatprep.mubr.bf16.mxu0 0
        %784 = vmatmul.mubr.bf16.gmra.mxu0 %v723
        %v785 = vpop.f32.mrf.mxu0
        %v786 = vadd.f32 %v693, %v785
        %v787 = vpop.f32.mrf.mxu0
        %v788 = vpop.f32.mrf.mxu0
        %v789 = vadd.f32 %v693, %v788
        %v790 = vpop.f32.mrf.mxu0
        %791 = vmatprep.mubr.bf16.mxu0 0
        %792 = vmatmul.mubr.bf16.gmra.mxu0 %v726
        %v793 = vpop.f32.mrf.mxu0
        %v794 = vadd.f32 %v693, %v793
        %v795 = vpop.f32.mrf.mxu0
        %v796 = vpop.f32.mrf.mxu0
        %v797 = vadd.f32 %v693, %v796
        %v798 = vpop.f32.mrf.mxu0
        %799 = vmatprep.mubr.bf16.mxu0 0
        %800 = vmatmul.mubr.bf16.gmra.mxu0 %v729
        %v801 = vpop.f32.mrf.mxu0
        %v802 = vadd.f32 %v693, %v801
        %v803 = vpop.f32.mrf.mxu0
        %v804 = vpop.f32.mrf.mxu0
        %v805 = vadd.f32 %v693, %v804
        %v806 = vpop.f32.mrf.mxu0
        %807 = vmatprep.mubr.bf16.mxu0 0
        %808 = vmatmul.mubr.bf16.gmra.mxu0 %v732
        %v809 = vpop.f32.mrf.mxu0
        %v810 = vadd.f32 %v693, %v809
        %v811 = vpop.f32.mrf.mxu0
        %v812 = vpop.f32.mrf.mxu0
        %v813 = vadd.f32 %v693, %v812
        %v814 = vpop.f32.mrf.mxu0
        %815 = vmatprep.mubr.bf16.mxu0 0
        %816 = vmatmul.mubr.bf16.gmra.mxu0 %v735
        %v817 = vpop.f32.mrf.mxu0
        %v818 = vadd.f32 %v693, %v817
        %v819 = vpop.f32.mrf.mxu0
        %v820 = vpop.f32.mrf.mxu0
        %v821 = vadd.f32 %v693, %v820
        %v822 = vpop.f32.mrf.mxu0
        %823 = vmatprep.mubr.bf16.mxu0 0
        %824 = vmatmul.mubr.bf16.gmra.mxu0 %v738
        %v825 = vpop.f32.mrf.mxu0
        %v826 = vadd.f32 %v693, %v825
        %v827 = vpop.f32.mrf.mxu0
        %v828 = vpop.f32.mrf.mxu0
        %v829 = vadd.f32 %v693, %v828
        %v830 = vpop.f32.mrf.mxu0
        %831 = vmatprep.mubr.bf16.mxu0 0
        %832 = vmatmul.mubr.bf16.gmra.mxu0 %v741
        %v833 = vpop.f32.mrf.mxu0
        %v834 = vadd.f32 %v693, %v833
        %v835 = vpop.f32.mrf.mxu0
        %v836 = vpop.f32.mrf.mxu0
        %v837 = vadd.f32 %v693, %v836
        %v838 = vpop.f32.mrf.mxu0
        %839 = vdwg.mxu0
        %840 = vst [vmem:[%s272] sm:$0xff] %v778
        %841 = vst [vmem:[%s272 + $0x8] sm:$0xff] %v781
        %842 = vst [vmem:[%s272 + $0x10] sm:$0xff] %v786
        %843 = vst [vmem:[%s272 + $0x18] sm:$0xff] %v789
        %844 = vst [vmem:[%s272 + $0x20] sm:$0xff] %v794
        %845 = vst [vmem:[%s272 + $0x28] sm:$0xff] %v797
        %846 = vst [vmem:[%s272 + $0x30] sm:$0xff] %v802
        %847 = vst [vmem:[%s272 + $0x38] sm:$0xff] %v805
        %848 = vst [vmem:[%s272 + $0x40] sm:$0xff] %v810
        %849 = vst [vmem:[%s272 + $0x48] sm:$0xff] %v813
        %850 = vst [vmem:[%s272 + $0x50] sm:$0xff] %v818
        %851 = vst [vmem:[%s272 + $0x58] sm:$0xff] %v821
        %852 = vst [vmem:[%s272 + $0x60] sm:$0xff] %v826
        %853 = vst [vmem:[%s272 + $0x68] sm:$0xff] %v829
        %854 = vst [vmem:[%s272 + $0x70] sm:$0xff] %v834
        %855 = vst [vmem:[%s272 + $0x78] sm:$0xff] %v837
        %s856 = sand.u32 %s181, 1
        %s857 = scalar_lea.sflag [#allocation3], %s856
        %s858 = sand.u32 %s181, 1
        %s859 = smul.addr %s858, 128
        %s860 = scalar_lea.vmem [#allocation2], %s859
        // Predicated region
        $region49: #{tpu_custom_call.1} parent=47 // pred_check
          %p861 = pneg %p191
        $region50: #{tpu_custom_call.1} parent=47 // pred_check_branch
          %863 = sbr.rel (%p861) target = $region52
        $region51: #{tpu_custom_call.1} parent=47 // pred_region
          %s864 = smul.u32 16, %s21
          %s866 = ssub.s32 2048, 2048
          %867 = vsyncadd %s857, %s866
          %s868 = smul.addr %s864, 128
          %s869 = scalar_lea.hbm %s7, %s868
          %s870 = sshll.u32 %s860, 4
          %s871 = int_to_ptr.vmem [resolvable:$true] %s870
          %876 = dma.vmem_to_hbm [thread:$0]  %s871, 2048, %s869, %s857, 128, 128, 8
        $region52: #{tpu_custom_call.1} parent=47 // pred_fallthru
          _
      $region48: #{tpu_custom_call.1} parent=5 // pred_fallthru
        _
      %p877 = scmp.le.s32.totalorder 2, %s16
      // Predicated region
      $region53: #{tpu_custom_call.1} parent=5 // pred_check
        %p878 = pneg %p877
      $region54: #{tpu_custom_call.1} parent=5 // pred_check_branch
        %880 = sbr.rel (%p878) target = $region56
      $region55: #{tpu_custom_call.1} parent=5 // pred_region
        %s881 = ssub.s32 %s16, 2
        // Predicated region
        $region57: #{tpu_custom_call.1} parent=55 // pred_check
          %p882 = pneg %p197
        $region58: #{tpu_custom_call.1} parent=55 // pred_check_branch
          %884 = sbr.rel (%p882) target = $region60
        $region59: #{tpu_custom_call.1} parent=55 // pred_region
          %s885 = sand.u32 %s182, 1
          %s886 = scalar_lea.sflag [#allocation3], %s885
          %s887 = sand.u32 %s182, 1
          %s888 = smul.addr %s887, 128
          %s889 = scalar_lea.vmem [#allocation2], %s888
          %890 = dma.done %s886, 2048
        $region60: #{tpu_custom_call.1} parent=55 // pred_fallthru
          _
      $region56: #{tpu_custom_call.1} parent=5 // pred_fallthru
        _
    $region6: #{tpu_custom_call.1} parent=1 // loop_footer
      %s20 = sadd.s32 1, %s16
    $region7: #{tpu_custom_call.1} parent=1 // loop_footer_branch
      %15 = sbr.rel target = $region3
    $region8: #{tpu_custom_call.1} parent=1 // loop_exit
      _
    %891 = vsyncpa [#allocation3], 1
    %s892 = scalar_lea.sflag [#allocation3], 1
    %893 = vsyncpa %s892, 1

</llo_original>
